<compile_context>
chip_gen: v5e
topology: v5e:2x2
jax: 0.10.0
libtpu: 0.0.40
codegen_flags: <defaults>
</compile_context>

<pallas_src>
import functools

import jax
import jax.numpy as jnp
from jax import lax
from jax.experimental import pallas as pl
from jax.experimental.pallas import tpu as pltpu

# Module hyperparameters (from the PyTorch file)
CONTEXT_SIZE = 2
EMBEDDING_DIM = 64
HIDDEN_DIM = 128
VOCAB_SIZE = 256      # small synthetic vocab (multiple of 128 -> lane-dense output)
BATCH = 8

CE = CONTEXT_SIZE * EMBEDDING_DIM  # flattened context feature width (= 128)


def _ffnn_lm_kernel(ids_ref,    # SMEM [B_pad, C]   int32  (scalar prefetch)
                    emb_ref,    # VMEM [V, E]       f32    (full table, resident)
                    w1_ref,     # VMEM [C*E, H]     bf16   (resident)
                    b1_ref,     # VMEM [1, H]       f32
                    w2_ref,     # VMEM [H, V]       bf16   (resident)
                    b2_ref,     # VMEM [1, V]       f32
                    o_ref,      # VMEM [TB, V]      f32    (log-probabilities tile)
                    x_scratch,  # VMEM [TB, C*E]    f32
                    *, tb):
    i = pl.program_id(0)

    # ---- fused embedding gather: build x_scratch[row, :] = concat(emb[tok_c]) ----
    def gather_row(row, carry):
        base = i * tb + row
        row_vec = jnp.concatenate(
            [emb_ref[pl.ds(ids_ref[base, c], 1), :] for c in range(CONTEXT_SIZE)],
            axis=1)                               # [1, C*E] (lane-dense, 128 wide)
        x_scratch[pl.ds(row, 1), :] = row_vec
        return carry

    # TODO(synk): for very large batch tiles, replace the per-row loop with a
    # vectorized gather (jnp.take on the VMEM table) to cut scalar-loop overhead.
    lax.fori_loop(0, tb, gather_row, 0, unroll=tb <= 16)

    # ---- MLP: bf16 matmul inputs, f32 accumulation, f32 epilogue ----
    x = x_scratch[...].astype(jnp.bfloat16)
    hidden = jnp.dot(x, w1_ref[...], preferred_element_type=jnp.float32) + b1_ref[...]
    hidden = jnp.maximum(hidden, 0.0)                                   # ReLU (f32 VPU)
    logits = jnp.dot(hidden.astype(jnp.bfloat16), w2_ref[...],
                     preferred_element_type=jnp.float32) + b2_ref[...]

    # numerically stable log_softmax over axis 1 (vocab); reductions -> XLU, exp/log -> EUP
    m = jnp.max(logits, axis=1, keepdims=True)
    shifted = logits - m
    lse = jnp.log(jnp.sum(jnp.exp(shifted), axis=1, keepdims=True))
    o_ref[...] = shifted - lse


def ffnn_lm_forward(inputs, embeddings, w1, b1, w2, b2, *, tb=None):
    """inputs: [B, context_size] int32 token ids. Returns log_probs [B, vocab_size] f32."""
    B = inputs.shape[0]

    # Batch tile: multiple of 8 sublanes, capped so the unrolled/looped gather stays cheap.
    if tb is None:
        tb = min(((B + 7) // 8) * 8, 256)
    B_pad = ((B + tb - 1) // tb) * tb
    num_tiles = B_pad // tb

    ids = inputs.astype(jnp.int32)
    if B_pad != B:
        ids = jnp.pad(ids, ((0, B_pad - B), (0, 0)))   # pad rows with token 0 (sliced off)

    cost = pl.CostEstimate(
        flops=2 * B_pad * (CE * HIDDEN_DIM + HIDDEN_DIM * VOCAB_SIZE),
        transcendentals=B_pad * (VOCAB_SIZE + 1),
        bytes_accessed=(ids.size * 4 + embeddings.size * 4
                        + w1.size * 2 + b1.size * 4
                        + w2.size * 2 + b2.size * 4
                        + B_pad * VOCAB_SIZE * 4),
    )

    grid_spec = pltpu.PrefetchScalarGridSpec(
        num_scalar_prefetch=1,                       # ids -> SMEM, passed to index_maps
        grid=(num_tiles,),
        in_specs=[
            pl.BlockSpec((VOCAB_SIZE, EMBEDDING_DIM), lambda i, ids_s: (0, 0)),  # emb table
            pl.BlockSpec((CE, HIDDEN_DIM),            lambda i, ids_s: (0, 0)),  # w1 (resident)
            pl.BlockSpec((1, HIDDEN_DIM),             lambda i, ids_s: (0, 0)),  # b1
            pl.BlockSpec((HIDDEN_DIM, VOCAB_SIZE),    lambda i, ids_s: (0, 0)),  # w2 (resident)
            pl.BlockSpec((1, VOCAB_SIZE),             lambda i, ids_s: (0, 0)),  # b2
        ],
        out_specs=pl.BlockSpec((tb, VOCAB_SIZE), lambda i, ids_s: (i, 0)),
        scratch_shapes=[pltpu.VMEM((tb, CE), jnp.float32)],
    )

    out = pl.pallas_call(
        functools.partial(_ffnn_lm_kernel, tb=tb),
        out_shape=jax.ShapeDtypeStruct((B_pad, VOCAB_SIZE), jnp.float32),
        grid_spec=grid_spec,
        compiler_params=pltpu.CompilerParams(dimension_semantics=("parallel",)),
        cost_estimate=cost,
    )(ids,
      embeddings.astype(jnp.float32),
      w1.astype(jnp.bfloat16), b1.astype(jnp.float32),
      w2.astype(jnp.bfloat16), b2.astype(jnp.float32))

    return out[:B]


def init_params(key):
    """Deterministic parameter init matching the module's shapes."""
    k_emb, k_w1, k_b1, k_w2, k_b2 = jax.random.split(key, 5)
    embeddings = jax.random.normal(k_emb, (VOCAB_SIZE, EMBEDDING_DIM), jnp.float32)
    # nn.Linear(context_size*embedding_dim, hidden_dim): weight (H, C*E) -> stored transposed (C*E, H)
    w1 = jax.random.normal(k_w1, (CE, HIDDEN_DIM), jnp.float32) * 0.05
    b1 = jax.random.normal(k_b1, (1, HIDDEN_DIM), jnp.float32) * 0.05
    # nn.Linear(hidden_dim, vocab_size): weight (V, H) -> stored transposed (H, V)
    w2 = jax.random.normal(k_w2, (HIDDEN_DIM, VOCAB_SIZE), jnp.float32) * 0.05
    b2 = jax.random.normal(k_b2, (1, VOCAB_SIZE), jnp.float32) * 0.05
    return embeddings, w1, b1, w2, b2


if __name__ == "__main__":
    key = jax.random.PRNGKey(0)
    k_params, k_inputs = jax.random.split(key)
    embeddings, w1, b1, w2, b2 = init_params(k_params)

    inputs = jax.random.randint(k_inputs, (BATCH, CONTEXT_SIZE), 0, VOCAB_SIZE, jnp.int32)

    log_probs = ffnn_lm_forward(inputs, embeddings, w1, b1, w2, b2)
    jax.block_until_ready(log_probs)

    # plain-JAX f32 reference of the same forward pass
    embeds_ref = jnp.take(embeddings, inputs, axis=0).reshape(BATCH, -1)
    hidden_ref = jnp.maximum(embeds_ref @ w1 + b1, 0.0)
    logits_ref = hidden_ref @ w2 + b2
    ref = jax.nn.log_softmax(logits_ref, axis=1)

    row_sums = jnp.exp(log_probs).sum(axis=1)
    assert log_probs.shape == (BATCH, VOCAB_SIZE)
    assert jnp.allclose(row_sums, 1.0, atol=1e-4)
    assert float(jnp.max(jnp.abs(log_probs - ref))) < 1e-1  # bf16-matmul tolerance

    print("KERNEL_OK")
</pallas_src>

<mosaic_0001>
module attributes {stable_mosaic.version = 11 : i64} {
  func.func @_ffnn_lm_kernel(%arg0: i32, %arg1: memref<8x2xi32, #tpu.memory_space<smem>>, %arg2: memref<256x64xf32, #tpu.memory_space<vmem>>, %arg3: memref<128x128xbf16, #tpu.memory_space<vmem>>, %arg4: memref<1x128xf32, #tpu.memory_space<vmem>>, %arg5: memref<128x256xbf16, #tpu.memory_space<vmem>>, %arg6: memref<1x256xf32, #tpu.memory_space<vmem>>, %arg7: memref<8x256xf32, #tpu.memory_space<vmem>>, %arg8: memref<8x128xf32, #tpu.memory_space<vmem>>) attributes {dimension_semantics = [#tpu.dimension_semantics<parallel>], iteration_bounds = array<i64: 1>, scalar_prefetch = 1 : i64, scratch_operands = 1 : i64, tpu.core_type = #tpu.core_type<tc>, window_params = [{pipeline_mode = #tpu.pipeline_mode<synchronous>, transform_indices = @transform_0, window_bounds = array<i64: 256, 64>}, {pipeline_mode = #tpu.pipeline_mode<synchronous>, transform_indices = @transform_1, window_bounds = array<i64: 128, 128>}, {pipeline_mode = #tpu.pipeline_mode<synchronous>, transform_indices = @transform_2, window_bounds = array<i64: 1, 128>}, {pipeline_mode = #tpu.pipeline_mode<synchronous>, transform_indices = @transform_3, window_bounds = array<i64: 128, 256>}, {pipeline_mode = #tpu.pipeline_mode<synchronous>, transform_indices = @transform_4, window_bounds = array<i64: 1, 256>}, {transform_indices = @transform_5, window_bounds = array<i64: 8, 256>}]} {
    %c0_i32 = arith.constant 0 : i32
    %c8_i32 = arith.constant 8 : i32
    %0 = arith.muli %arg0, %c8_i32 : i32
    %1 = arith.addi %0, %c0_i32 : i32
    %2 = arith.index_cast %1 : i32 to index
    %c0 = arith.constant 0 : index
    %3 = memref.load %arg1[%2, %c0] : memref<8x2xi32, #tpu.memory_space<smem>>
    %4 = arith.index_cast %3 : i32 to index
    %c0_0 = arith.constant 0 : index
    %5 = vector.load %arg2[%4, %c0_0] : memref<256x64xf32, #tpu.memory_space<vmem>>, vector<1x64xf32>
    %6 = arith.index_cast %1 : i32 to index
    %c1 = arith.constant 1 : index
    %7 = memref.load %arg1[%6, %c1] : memref<8x2xi32, #tpu.memory_space<smem>>
    %8 = arith.index_cast %7 : i32 to index
    %c0_1 = arith.constant 0 : index
    %9 = vector.load %arg2[%8, %c0_1] : memref<256x64xf32, #tpu.memory_space<vmem>>, vector<1x64xf32>
    %10 = tpu.concatenate %5, %9 in 1 : vector<1x64xf32>, vector<1x64xf32> -> vector<1x128xf32>
    %11 = arith.index_cast %c0_i32 : i32 to index
    %c0_2 = arith.constant 0 : index
    %12 = vector.load %arg8[%11, %c0_2] : memref<8x128xf32, #tpu.memory_space<vmem>>, vector<1x128xf32>
    tpu.vector_store %arg8[%11, %c0_2], %10 {strides = array<i32>} : memref<8x128xf32, #tpu.memory_space<vmem>>, vector<1x128xf32>,
    %c1_i32 = arith.constant 1 : i32
    %c8_i32_3 = arith.constant 8 : i32
    %13 = arith.muli %arg0, %c8_i32_3 : i32
    %14 = arith.addi %13, %c1_i32 : i32
    %15 = arith.index_cast %14 : i32 to index
    %c0_4 = arith.constant 0 : index
    %16 = memref.load %arg1[%15, %c0_4] : memref<8x2xi32, #tpu.memory_space<smem>>
    %17 = arith.index_cast %16 : i32 to index
    %c0_5 = arith.constant 0 : index
    %18 = vector.load %arg2[%17, %c0_5] : memref<256x64xf32, #tpu.memory_space<vmem>>, vector<1x64xf32>
    %19 = arith.index_cast %14 : i32 to index
    %c1_6 = arith.constant 1 : index
    %20 = memref.load %arg1[%19, %c1_6] : memref<8x2xi32, #tpu.memory_space<smem>>
    %21 = arith.index_cast %20 : i32 to index
    %c0_7 = arith.constant 0 : index
    %22 = vector.load %arg2[%21, %c0_7] : memref<256x64xf32, #tpu.memory_space<vmem>>, vector<1x64xf32>
    %23 = tpu.concatenate %18, %22 in 1 : vector<1x64xf32>, vector<1x64xf32> -> vector<1x128xf32>
    %24 = arith.index_cast %c1_i32 : i32 to index
    %c0_8 = arith.constant 0 : index
    %25 = vector.load %arg8[%24, %c0_8] : memref<8x128xf32, #tpu.memory_space<vmem>>, vector<1x128xf32>
    tpu.vector_store %arg8[%24, %c0_8], %23 {strides = array<i32>} : memref<8x128xf32, #tpu.memory_space<vmem>>, vector<1x128xf32>,
    %c2_i32 = arith.constant 2 : i32
    %c8_i32_9 = arith.constant 8 : i32
    %26 = arith.muli %arg0, %c8_i32_9 : i32
    %27 = arith.addi %26, %c2_i32 : i32
    %28 = arith.index_cast %27 : i32 to index
    %c0_10 = arith.constant 0 : index
    %29 = memref.load %arg1[%28, %c0_10] : memref<8x2xi32, #tpu.memory_space<smem>>
    %30 = arith.index_cast %29 : i32 to index
    %c0_11 = arith.constant 0 : index
    %31 = vector.load %arg2[%30, %c0_11] : memref<256x64xf32, #tpu.memory_space<vmem>>, vector<1x64xf32>
    %32 = arith.index_cast %27 : i32 to index
    %c1_12 = arith.constant 1 : index
    %33 = memref.load %arg1[%32, %c1_12] : memref<8x2xi32, #tpu.memory_space<smem>>
    %34 = arith.index_cast %33 : i32 to index
    %c0_13 = arith.constant 0 : index
    %35 = vector.load %arg2[%34, %c0_13] : memref<256x64xf32, #tpu.memory_space<vmem>>, vector<1x64xf32>
    %36 = tpu.concatenate %31, %35 in 1 : vector<1x64xf32>, vector<1x64xf32> -> vector<1x128xf32>
    %37 = arith.index_cast %c2_i32 : i32 to index
    %c0_14 = arith.constant 0 : index
    %38 = vector.load %arg8[%37, %c0_14] : memref<8x128xf32, #tpu.memory_space<vmem>>, vector<1x128xf32>
    tpu.vector_store %arg8[%37, %c0_14], %36 {strides = array<i32>} : memref<8x128xf32, #tpu.memory_space<vmem>>, vector<1x128xf32>,
    %c3_i32 = arith.constant 3 : i32
    %c8_i32_15 = arith.constant 8 : i32
    %39 = arith.muli %arg0, %c8_i32_15 : i32
    %40 = arith.addi %39, %c3_i32 : i32
    %41 = arith.index_cast %40 : i32 to index
    %c0_16 = arith.constant 0 : index
    %42 = memref.load %arg1[%41, %c0_16] : memref<8x2xi32, #tpu.memory_space<smem>>
    %43 = arith.index_cast %42 : i32 to index
    %c0_17 = arith.constant 0 : index
    %44 = vector.load %arg2[%43, %c0_17] : memref<256x64xf32, #tpu.memory_space<vmem>>, vector<1x64xf32>
    %45 = arith.index_cast %40 : i32 to index
    %c1_18 = arith.constant 1 : index
    %46 = memref.load %arg1[%45, %c1_18] : memref<8x2xi32, #tpu.memory_space<smem>>
    %47 = arith.index_cast %46 : i32 to index
    %c0_19 = arith.constant 0 : index
    %48 = vector.load %arg2[%47, %c0_19] : memref<256x64xf32, #tpu.memory_space<vmem>>, vector<1x64xf32>
    %49 = tpu.concatenate %44, %48 in 1 : vector<1x64xf32>, vector<1x64xf32> -> vector<1x128xf32>
    %50 = arith.index_cast %c3_i32 : i32 to index
    %c0_20 = arith.constant 0 : index
    %51 = vector.load %arg8[%50, %c0_20] : memref<8x128xf32, #tpu.memory_space<vmem>>, vector<1x128xf32>
    tpu.vector_store %arg8[%50, %c0_20], %49 {strides = array<i32>} : memref<8x128xf32, #tpu.memory_space<vmem>>, vector<1x128xf32>,
    %c4_i32 = arith.constant 4 : i32
    %c8_i32_21 = arith.constant 8 : i32
    %52 = arith.muli %arg0, %c8_i32_21 : i32
    %53 = arith.addi %52, %c4_i32 : i32
    %54 = arith.index_cast %53 : i32 to index
    %c0_22 = arith.constant 0 : index
    %55 = memref.load %arg1[%54, %c0_22] : memref<8x2xi32, #tpu.memory_space<smem>>
    %56 = arith.index_cast %55 : i32 to index
    %c0_23 = arith.constant 0 : index
    %57 = vector.load %arg2[%56, %c0_23] : memref<256x64xf32, #tpu.memory_space<vmem>>, vector<1x64xf32>
    %58 = arith.index_cast %53 : i32 to index
    %c1_24 = arith.constant 1 : index
    %59 = memref.load %arg1[%58, %c1_24] : memref<8x2xi32, #tpu.memory_space<smem>>
    %60 = arith.index_cast %59 : i32 to index
    %c0_25 = arith.constant 0 : index
    %61 = vector.load %arg2[%60, %c0_25] : memref<256x64xf32, #tpu.memory_space<vmem>>, vector<1x64xf32>
    %62 = tpu.concatenate %57, %61 in 1 : vector<1x64xf32>, vector<1x64xf32> -> vector<1x128xf32>
    %63 = arith.index_cast %c4_i32 : i32 to index
    %c0_26 = arith.constant 0 : index
    %64 = vector.load %arg8[%63, %c0_26] : memref<8x128xf32, #tpu.memory_space<vmem>>, vector<1x128xf32>
    tpu.vector_store %arg8[%63, %c0_26], %62 {strides = array<i32>} : memref<8x128xf32, #tpu.memory_space<vmem>>, vector<1x128xf32>,
    %c5_i32 = arith.constant 5 : i32
    %c8_i32_27 = arith.constant 8 : i32
    %65 = arith.muli %arg0, %c8_i32_27 : i32
    %66 = arith.addi %65, %c5_i32 : i32
    %67 = arith.index_cast %66 : i32 to index
    %c0_28 = arith.constant 0 : index
    %68 = memref.load %arg1[%67, %c0_28] : memref<8x2xi32, #tpu.memory_space<smem>>
    %69 = arith.index_cast %68 : i32 to index
    %c0_29 = arith.constant 0 : index
    %70 = vector.load %arg2[%69, %c0_29] : memref<256x64xf32, #tpu.memory_space<vmem>>, vector<1x64xf32>
    %71 = arith.index_cast %66 : i32 to index
    %c1_30 = arith.constant 1 : index
    %72 = memref.load %arg1[%71, %c1_30] : memref<8x2xi32, #tpu.memory_space<smem>>
    %73 = arith.index_cast %72 : i32 to index
    %c0_31 = arith.constant 0 : index
    %74 = vector.load %arg2[%73, %c0_31] : memref<256x64xf32, #tpu.memory_space<vmem>>, vector<1x64xf32>
    %75 = tpu.concatenate %70, %74 in 1 : vector<1x64xf32>, vector<1x64xf32> -> vector<1x128xf32>
    %76 = arith.index_cast %c5_i32 : i32 to index
    %c0_32 = arith.constant 0 : index
    %77 = vector.load %arg8[%76, %c0_32] : memref<8x128xf32, #tpu.memory_space<vmem>>, vector<1x128xf32>
    tpu.vector_store %arg8[%76, %c0_32], %75 {strides = array<i32>} : memref<8x128xf32, #tpu.memory_space<vmem>>, vector<1x128xf32>,
    %c6_i32 = arith.constant 6 : i32
    %c8_i32_33 = arith.constant 8 : i32
    %78 = arith.muli %arg0, %c8_i32_33 : i32
    %79 = arith.addi %78, %c6_i32 : i32
    %80 = arith.index_cast %79 : i32 to index
    %c0_34 = arith.constant 0 : index
    %81 = memref.load %arg1[%80, %c0_34] : memref<8x2xi32, #tpu.memory_space<smem>>
    %82 = arith.index_cast %81 : i32 to index
    %c0_35 = arith.constant 0 : index
    %83 = vector.load %arg2[%82, %c0_35] : memref<256x64xf32, #tpu.memory_space<vmem>>, vector<1x64xf32>
    %84 = arith.index_cast %79 : i32 to index
    %c1_36 = arith.constant 1 : index
    %85 = memref.load %arg1[%84, %c1_36] : memref<8x2xi32, #tpu.memory_space<smem>>
    %86 = arith.index_cast %85 : i32 to index
    %c0_37 = arith.constant 0 : index
    %87 = vector.load %arg2[%86, %c0_37] : memref<256x64xf32, #tpu.memory_space<vmem>>, vector<1x64xf32>
    %88 = tpu.concatenate %83, %87 in 1 : vector<1x64xf32>, vector<1x64xf32> -> vector<1x128xf32>
    %89 = arith.index_cast %c6_i32 : i32 to index
    %c0_38 = arith.constant 0 : index
    %90 = vector.load %arg8[%89, %c0_38] : memref<8x128xf32, #tpu.memory_space<vmem>>, vector<1x128xf32>
    tpu.vector_store %arg8[%89, %c0_38], %88 {strides = array<i32>} : memref<8x128xf32, #tpu.memory_space<vmem>>, vector<1x128xf32>,
    %c7_i32 = arith.constant 7 : i32
    %c8_i32_39 = arith.constant 8 : i32
    %91 = arith.muli %arg0, %c8_i32_39 : i32
    %92 = arith.addi %91, %c7_i32 : i32
    %93 = arith.index_cast %92 : i32 to index
    %c0_40 = arith.constant 0 : index
    %94 = memref.load %arg1[%93, %c0_40] : memref<8x2xi32, #tpu.memory_space<smem>>
    %95 = arith.index_cast %94 : i32 to index
    %c0_41 = arith.constant 0 : index
    %96 = vector.load %arg2[%95, %c0_41] : memref<256x64xf32, #tpu.memory_space<vmem>>, vector<1x64xf32>
    %97 = arith.index_cast %92 : i32 to index
    %c1_42 = arith.constant 1 : index
    %98 = memref.load %arg1[%97, %c1_42] : memref<8x2xi32, #tpu.memory_space<smem>>
    %99 = arith.index_cast %98 : i32 to index
    %c0_43 = arith.constant 0 : index
    %100 = vector.load %arg2[%99, %c0_43] : memref<256x64xf32, #tpu.memory_space<vmem>>, vector<1x64xf32>
    %101 = tpu.concatenate %96, %100 in 1 : vector<1x64xf32>, vector<1x64xf32> -> vector<1x128xf32>
    %102 = arith.index_cast %c7_i32 : i32 to index
    %c0_44 = arith.constant 0 : index
    %103 = vector.load %arg8[%102, %c0_44] : memref<8x128xf32, #tpu.memory_space<vmem>>, vector<1x128xf32>
    tpu.vector_store %arg8[%102, %c0_44], %101 {strides = array<i32>} : memref<8x128xf32, #tpu.memory_space<vmem>>, vector<1x128xf32>,
    %c8_i32_45 = arith.constant 8 : i32
    %c0_46 = arith.constant 0 : index
    %c0_47 = arith.constant 0 : index
    %104 = vector.load %arg8[%c0_46, %c0_47] : memref<8x128xf32, #tpu.memory_space<vmem>>, vector<8x128xf32>
    %105 = arith.truncf %104 : vector<8x128xf32> to vector<8x128xbf16>
    %c0_48 = arith.constant 0 : index
    %c0_49 = arith.constant 0 : index
    %106 = vector.load %arg3[%c0_48, %c0_49] : memref<128x128xbf16, #tpu.memory_space<vmem>>, vector<128x128xbf16>
    %cst = arith.constant dense<0.000000e+00> : vector<8x128xf32>
    %107 = tpu.matmul %105, %106, %cst {dimension_numbers = #tpu.dot_dimension_numbers<[1], [0], [0], [1], [0, 0, 1, 1], [], []>} : vector<8x128xbf16>, vector<128x128xbf16>, vector<8x128xf32> -> vector<8x128xf32>
    %c0_50 = arith.constant 0 : index
    %c0_51 = arith.constant 0 : index
    %108 = vector.load %arg4[%c0_50, %c0_51] : memref<1x128xf32, #tpu.memory_space<vmem>>, vector<1x128xf32>
    %109 = vector.broadcast %108 : vector<1x128xf32> to vector<8x128xf32>
    %110 = arith.addf %107, %109 : vector<8x128xf32>
    %cst_52 = arith.constant 0.000000e+00 : f32
    %111 = vector.broadcast %cst_52 : f32 to vector<8x128xf32>
    %112 = arith.maximumf %110, %111 : vector<8x128xf32>
    %113 = arith.truncf %112 : vector<8x128xf32> to vector<8x128xbf16>
    %c0_53 = arith.constant 0 : index
    %c0_54 = arith.constant 0 : index
    %114 = vector.load %arg5[%c0_53, %c0_54] : memref<128x256xbf16, #tpu.memory_space<vmem>>, vector<128x256xbf16>
    %cst_55 = arith.constant dense<0.000000e+00> : vector<8x256xf32>
    %115 = tpu.matmul %113, %114, %cst_55 {dimension_numbers = #tpu.dot_dimension_numbers<[1], [0], [0], [1], [0, 0, 1, 1], [], []>} : vector<8x128xbf16>, vector<128x256xbf16>, vector<8x256xf32> -> vector<8x256xf32>
    %c0_56 = arith.constant 0 : index
    %c0_57 = arith.constant 0 : index
    %116 = vector.load %arg6[%c0_56, %c0_57] : memref<1x256xf32, #tpu.memory_space<vmem>>, vector<1x256xf32>
    %117 = vector.broadcast %116 : vector<1x256xf32> to vector<8x256xf32>
    %118 = arith.addf %115, %117 : vector<8x256xf32>
    %cst_58 = arith.constant dense<0xFF800000> : vector<8xf32>
    %119 = vector.multi_reduction <maximumf>, %118, %cst_58 [1] : vector<8x256xf32> to vector<8xf32>
    %120 = vector.shape_cast %119 : vector<8xf32> to vector<8x1xf32>
    %121 = vector.broadcast %120 : vector<8x1xf32> to vector<8x256xf32>
    %122 = arith.subf %118, %121 : vector<8x256xf32>
    %123 = math.exp %122 : vector<8x256xf32>
    %cst_59 = arith.constant dense<0.000000e+00> : vector<8xf32>
    %124 = vector.multi_reduction <add>, %123, %cst_59 [1] : vector<8x256xf32> to vector<8xf32>
    %125 = vector.shape_cast %124 : vector<8xf32> to vector<8x1xf32>
    %126 = math.log %125 : vector<8x1xf32>
    %127 = vector.broadcast %126 : vector<8x1xf32> to vector<8x256xf32>
    %128 = arith.subf %122, %127 : vector<8x256xf32>
    %c0_60 = arith.constant 0 : index
    %c0_61 = arith.constant 0 : index
    %129 = vector.load %arg7[%c0_60, %c0_61] : memref<8x256xf32, #tpu.memory_space<vmem>>, vector<8x256xf32>
    tpu.vector_store %arg7[%c0_60, %c0_61], %128 {strides = array<i32>} : memref<8x256xf32, #tpu.memory_space<vmem>>, vector<8x256xf32>,
    return
  }
  func.func @transform_0(%arg0: i32, %arg1: memref<8x2xi32, #tpu.memory_space<smem>>) -> (i32, i32) {
    %c0_i32 = arith.constant 0 : i32
    %c0_i32_0 = arith.constant 0 : i32
    %c0_i32_1 = arith.constant 0 : i32
    return %c0_i32, %c0_i32_0 : i32, i32
  }
  func.func @transform_1(%arg0: i32, %arg1: memref<8x2xi32, #tpu.memory_space<smem>>) -> (i32, i32) {
    %c0_i32 = arith.constant 0 : i32
    %c0_i32_0 = arith.constant 0 : i32
    %c0_i32_1 = arith.constant 0 : i32
    return %c0_i32, %c0_i32_0 : i32, i32
  }
  func.func @transform_2(%arg0: i32, %arg1: memref<8x2xi32, #tpu.memory_space<smem>>) -> (i32, i32) {
    %c0_i32 = arith.constant 0 : i32
    %c0_i32_0 = arith.constant 0 : i32
    %c0_i32_1 = arith.constant 0 : i32
    return %c0_i32, %c0_i32_0 : i32, i32
  }
  func.func @transform_3(%arg0: i32, %arg1: memref<8x2xi32, #tpu.memory_space<smem>>) -> (i32, i32) {
    %c0_i32 = arith.constant 0 : i32
    %c0_i32_0 = arith.constant 0 : i32
    %c0_i32_1 = arith.constant 0 : i32
    return %c0_i32, %c0_i32_0 : i32, i32
  }
  func.func @transform_4(%arg0: i32, %arg1: memref<8x2xi32, #tpu.memory_space<smem>>) -> (i32, i32) {
    %c0_i32 = arith.constant 0 : i32
    %c0_i32_0 = arith.constant 0 : i32
    %c0_i32_1 = arith.constant 0 : i32
    return %c0_i32, %c0_i32_0 : i32, i32
  }
  func.func @transform_5(%arg0: i32, %arg1: memref<8x2xi32, #tpu.memory_space<smem>>) -> (i32, i32) {
    %c0_i32 = arith.constant 0 : i32
    %c0_i32_0 = arith.constant 0 : i32
    return %arg0, %c0_i32 : i32, i32
  }
}

</mosaic_0001>

<llo_original>
// kernel: tpu_custom_call.1
$region0: #{tpu_custom_call.1}
  #allocation0 [shape = 'u32[]', space=smem, size = 0x4, offset = 0x4, fixed_abs, tag = 'smem constant byte address 0x4 - core index']
  #allocation1 [shape = 'u32[72,128]{1,0:T(1,128)}', space=vmem, size = 0x9000, scoped, tag = 'internal scratch']
  #allocation2 [shape = 'f32[8,128]{1,0:T(8,128)}', space=vmem, size = 0x1000, scoped, tag = 'scratch operand']
  #allocation3 [shape = 's32[1]{0}', space=sflag, size = 0x4, scoped, tag = 'scoped memory for tpu_custom_call.1']
  #allocation4 [shape = 'u8[4096]{0}', space=smem, size = 0x1000, scoped, tag = 'prefetched SMEM operand 0']
  %s0 = inlined_call_operand.vmem [shape: s32[8,2], index: 0, kind: input, shape index: {}]
  %s1 = inlined_call_operand.vmem [shape: f32[256,64], index: 1, kind: input, shape index: {}]
  %s2 = inlined_call_operand.vmem [shape: bf16[128,128], index: 2, kind: input, shape index: {}]
  %s3 = inlined_call_operand.vmem [shape: f32[1,128], index: 3, kind: input, shape index: {}]
  %s4 = inlined_call_operand.vmem [shape: bf16[128,256], index: 4, kind: input, shape index: {}]
  %s5 = inlined_call_operand.vmem [shape: f32[1,256], index: 5, kind: input, shape index: {}]
  %s6 = inlined_call_operand.hbm [shape: f32[8,256], index: 6, kind: output, shape index: {}]
  %s7 = sld [smem:[#allocation0]]
  $region30: #{tpu_custom_call.1} parent=0
    _
  %s9 = ssub.s32 1, %s7
  %s10 = scalar_select 0, %s9, %s7
  %s12 = sshll.u32 %s0, 4
  %s13 = int_to_ptr.vmem [resolvable:$true] %s12
  %15 = dma.vmem_to_smem %s13, 128, [#allocation4], [#allocation3]
  %17 = dma.done [#allocation3], 128
  %18 = sfence
  $region1: #{tpu_custom_call.1} parent=0
    #allocation5 [shape = 'u8[8192]{0}', space=vmem, size = 0x2000, scoped, tag = 'output window, operand 0, single buffered']
    #allocation6 [shape = 's32[1]{0}', space=sflag, size = 0x4, scoped, tag = 'scoped memory for tpu_custom_call.1']
    %19 = vsyncpa [#allocation6], 0
    // Predicated region
    $region2: #{tpu_custom_call.1} parent=1 // pred_check
      _
    $region3: #{tpu_custom_call.1} parent=1 // pred_check_branch
      %21 = sbr.rel (0) target = $region5
    $region4: #{tpu_custom_call.1} parent=1 // pred_region
      _
    $region5: #{tpu_custom_call.1} parent=1 // pred_fallthru
      _
    // Predicated region
    $region6: #{tpu_custom_call.1} parent=1 // pred_check
      _
    $region7: #{tpu_custom_call.1} parent=1 // pred_check_branch
      %23 = sbr.rel (0) target = $region9
    $region8: #{tpu_custom_call.1} parent=1 // pred_region
      _
    $region9: #{tpu_custom_call.1} parent=1 // pred_fallthru
      _
    // Predicated region
    $region10: #{tpu_custom_call.1} parent=1 // pred_check
      _
    $region11: #{tpu_custom_call.1} parent=1 // pred_check_branch
      %25 = sbr.rel (0) target = $region13
    $region12: #{tpu_custom_call.1} parent=1 // pred_region
      _
    $region13: #{tpu_custom_call.1} parent=1 // pred_fallthru
      _
    // Predicated region
    $region14: #{tpu_custom_call.1} parent=1 // pred_check
      _
    $region15: #{tpu_custom_call.1} parent=1 // pred_check_branch
      %27 = sbr.rel (0) target = $region17
    $region16: #{tpu_custom_call.1} parent=1 // pred_region
      _
    $region17: #{tpu_custom_call.1} parent=1 // pred_fallthru
      _
    // Predicated region
    $region18: #{tpu_custom_call.1} parent=1 // pred_check
      _
    $region19: #{tpu_custom_call.1} parent=1 // pred_check_branch
      %29 = sbr.rel (0) target = $region21
    $region20: #{tpu_custom_call.1} parent=1 // pred_region
      _
    $region21: #{tpu_custom_call.1} parent=1 // pred_fallthru
      _
    %s30 = smul.u32 0, 8
    %s31 = smul.u32 %s30, 128
    %s32 = sld [smem:[#allocation4 + %s31]]
    %s33 = scalar_lea.vmem %s1, %s32
    %v34 = vld [vmem:[%s33] sm:$0x1]
    %s35 = sadd.s32 %s31, 1
    %s36 = sld [smem:[#allocation4 + %s35]]
    %s37 = scalar_lea.vmem %s1, %s36
    %v38 = vld [vmem:[%s37] sm:$0x1]
    %40 = vrot.lane.b32.xlu0 %v38, 64
    %v41 = vpop.permute.xlu0 %40
    %vm43 = vcmask 523264
    %v44 = vsel %vm43, %v34, %v41
    %45 = vst [vmem:[#allocation2] sm:$0x1] %v44
    %s46 = sadd.s32 %s30, 1
    %s47 = smul.u32 %s46, 128
    %s48 = sld [smem:[#allocation4 + %s47]]
    %s49 = scalar_lea.vmem %s1, %s48
    %v50 = vld [vmem:[%s49] sm:$0x1]
    %s51 = sadd.s32 %s47, 1
    %s52 = sld [smem:[#allocation4 + %s51]]
    %s53 = scalar_lea.vmem %s1, %s52
    %v54 = vld [vmem:[%s53] sm:$0x1]
    %56 = vrot.lane.b32.xlu0 %v54, 64
    %v57 = vpop.permute.xlu0 %56
    %v59 = vsel %vm43, %v50, %v57
    %60 = vst [vmem:[#allocation2 + $0x1] sm:$0x1] %v59
    %s61 = sadd.s32 %s30, 2
    %s62 = smul.u32 %s61, 128
    %s63 = sld [smem:[#allocation4 + %s62]]
    %s64 = scalar_lea.vmem %s1, %s63
    %v65 = vld [vmem:[%s64] sm:$0x1]
    %s66 = sadd.s32 %s62, 1
    %s67 = sld [smem:[#allocation4 + %s66]]
    %s68 = scalar_lea.vmem %s1, %s67
    %v69 = vld [vmem:[%s68] sm:$0x1]
    %71 = vrot.lane.b32.xlu0 %v69, 64
    %v72 = vpop.permute.xlu0 %71
    %v74 = vsel %vm43, %v65, %v72
    %75 = vst [vmem:[#allocation2 + $0x2] sm:$0x1] %v74
    %s76 = sadd.s32 %s30, 3
    %s77 = smul.u32 %s76, 128
    %s78 = sld [smem:[#allocation4 + %s77]]
    %s79 = scalar_lea.vmem %s1, %s78
    %v80 = vld [vmem:[%s79] sm:$0x1]
    %s81 = sadd.s32 %s77, 1
    %s82 = sld [smem:[#allocation4 + %s81]]
    %s83 = scalar_lea.vmem %s1, %s82
    %v84 = vld [vmem:[%s83] sm:$0x1]
    %86 = vrot.lane.b32.xlu0 %v84, 64
    %v87 = vpop.permute.xlu0 %86
    %v89 = vsel %vm43, %v80, %v87
    %90 = vst [vmem:[#allocation2 + $0x3] sm:$0x1] %v89
    %s91 = sadd.s32 %s30, 4
    %s92 = smul.u32 %s91, 128
    %s93 = sld [smem:[#allocation4 + %s92]]
    %s94 = scalar_lea.vmem %s1, %s93
    %v95 = vld [vmem:[%s94] sm:$0x1]
    %s96 = sadd.s32 %s92, 1
    %s97 = sld [smem:[#allocation4 + %s96]]
    %s98 = scalar_lea.vmem %s1, %s97
    %v99 = vld [vmem:[%s98] sm:$0x1]
    %101 = vrot.lane.b32.xlu0 %v99, 64
    %v102 = vpop.permute.xlu0 %101
    %v104 = vsel %vm43, %v95, %v102
    %105 = vst [vmem:[#allocation2 + $0x4] sm:$0x1] %v104
    %s106 = sadd.s32 %s30, 5
    %s107 = smul.u32 %s106, 128
    %s108 = sld [smem:[#allocation4 + %s107]]
    %s109 = scalar_lea.vmem %s1, %s108
    %v110 = vld [vmem:[%s109] sm:$0x1]
    %s111 = sadd.s32 %s107, 1
    %s112 = sld [smem:[#allocation4 + %s111]]
    %s113 = scalar_lea.vmem %s1, %s112
    %v114 = vld [vmem:[%s113] sm:$0x1]
    %116 = vrot.lane.b32.xlu0 %v114, 64
    %v117 = vpop.permute.xlu0 %116
    %v119 = vsel %vm43, %v110, %v117
    %120 = vst [vmem:[#allocation2 + $0x5] sm:$0x1] %v119
    %s121 = sadd.s32 %s30, 6
    %s122 = smul.u32 %s121, 128
    %s123 = sld [smem:[#allocation4 + %s122]]
    %s124 = scalar_lea.vmem %s1, %s123
    %v125 = vld [vmem:[%s124] sm:$0x1]
    %s126 = sadd.s32 %s122, 1
    %s127 = sld [smem:[#allocation4 + %s126]]
    %s128 = scalar_lea.vmem %s1, %s127
    %v129 = vld [vmem:[%s128] sm:$0x1]
    %131 = vrot.lane.b32.xlu0 %v129, 64
    %v132 = vpop.permute.xlu0 %131
    %v134 = vsel %vm43, %v125, %v132
    %135 = vst [vmem:[#allocation2 + $0x6] sm:$0x1] %v134
    %s136 = sadd.s32 %s30, 7
    %s137 = smul.u32 %s136, 128
    %s138 = sld [smem:[#allocation4 + %s137]]
    %s139 = scalar_lea.vmem %s1, %s138
    %v140 = vld [vmem:[%s139] sm:$0x1]
    %s141 = sadd.s32 %s137, 1
    %s142 = sld [smem:[#allocation4 + %s141]]
    %s143 = scalar_lea.vmem %s1, %s142
    %v144 = vld [vmem:[%s143] sm:$0x1]
    %146 = vrot.lane.b32.xlu0 %v144, 64
    %v147 = vpop.permute.xlu0 %146
    %v149 = vsel %vm43, %v140, %v147
    %150 = vst [vmem:[#allocation2 + $0x7] sm:$0x1] %v149
    %v151 = vld [vmem:[#allocation2] sm:$0xff]
    %v152 = vpack.c.bf16 %v151, %v151
    %v153 = vld [vmem:[%s2] sm:$0xf]
    %v154 = vld [vmem:[%s2 + $0x4] sm:$0xf]
    %v155 = vld [vmem:[%s2 + $0x8] sm:$0xf]
    %v156 = vld [vmem:[%s2 + $0xc] sm:$0xf]
    %v157 = vld [vmem:[%s2 + $0x10] sm:$0xf]
    %v158 = vld [vmem:[%s2 + $0x14] sm:$0xf]
    %v159 = vld [vmem:[%s2 + $0x18] sm:$0xf]
    %v160 = vld [vmem:[%s2 + $0x1c] sm:$0xf]
    %v161 = vld [vmem:[%s2 + $0x20] sm:$0xf]
    %v162 = vld [vmem:[%s2 + $0x24] sm:$0xf]
    %v163 = vld [vmem:[%s2 + $0x28] sm:$0xf]
    %v164 = vld [vmem:[%s2 + $0x2c] sm:$0xf]
    %v165 = vld [vmem:[%s2 + $0x30] sm:$0xf]
    %v166 = vld [vmem:[%s2 + $0x34] sm:$0xf]
    %v167 = vld [vmem:[%s2 + $0x38] sm:$0xf]
    %v168 = vld [vmem:[%s2 + $0x3c] sm:$0xf]
    %v169 = vld [vmem:[%s3] sm:$0x1]
    %v171 = vperm.slane %v169, 0
    %v189 = vunpack.c.l.b16 %v153
    %v190 = vunpack.c.l.b16 %v154
    %v191 = vunpack.c.l.b16 %v155
    %v192 = vunpack.c.l.b16 %v156
    %v193 = vunpack.c.l.b16 %v157
    %v194 = vunpack.c.l.b16 %v158
    %v195 = vunpack.c.l.b16 %v159
    %v196 = vunpack.c.l.b16 %v160
    %v197 = vunpack.c.l.b16 %v161
    %v198 = vunpack.c.l.b16 %v162
    %v199 = vunpack.c.l.b16 %v163
    %v200 = vunpack.c.l.b16 %v164
    %v201 = vunpack.c.l.b16 %v165
    %v202 = vunpack.c.l.b16 %v166
    %v203 = vunpack.c.l.b16 %v167
    %v204 = vunpack.c.l.b16 %v168
    %v205 = vpack.c.b16 %v190, %v189
    %v206 = vpack.c.b16 %v192, %v191
    %v207 = vpack.c.b16 %v194, %v193
    %v208 = vpack.c.b16 %v196, %v195
    %v209 = vpack.c.b16 %v198, %v197
    %v210 = vpack.c.b16 %v200, %v199
    %v211 = vpack.c.b16 %v202, %v201
    %v212 = vpack.c.b16 %v204, %v203
    %221 = vmatpush.bf16.msra.mxu0 %v212
    %222 = vmatpush.bf16.msra.mxu0 %v211
    %223 = vmatpush.bf16.msra.mxu0 %v210
    %224 = vmatpush.bf16.msra.mxu0 %v209
    %225 = vmatpush.bf16.msra.mxu0 %v208
    %226 = vmatpush.bf16.msra.mxu0 %v207
    %227 = vmatpush.bf16.msra.mxu0 %v206
    %228 = vmatpush.bf16.msra.mxu0 %v205
    %229 = vmatmul.bf16.gmra.mxu0 %v152
    %v230 = vpop.f32.mrf.mxu0
    %v231 = vadd.f32 %v171, %v230
    %v232 = vpop.f32.mrf.mxu0
    %233 = vdwg.mxu0
    %v234 = vmax.f32 %v231, 0.0
    %v235 = vpack.c.bf16 %v234, %v234
    %v236 = vld [vmem:[%s4] sm:$0xff]
    %v237 = vld [vmem:[%s4 + $0x8] sm:$0xff]
    %v238 = vld [vmem:[%s4 + $0x10] sm:$0xff]
    %v239 = vld [vmem:[%s4 + $0x18] sm:$0xff]
    %v240 = vld [vmem:[%s4 + $0x20] sm:$0xff]
    %v241 = vld [vmem:[%s4 + $0x28] sm:$0xff]
    %v242 = vld [vmem:[%s4 + $0x30] sm:$0xff]
    %v243 = vld [vmem:[%s4 + $0x38] sm:$0xff]
    %v244 = vld [vmem:[%s4 + $0x40] sm:$0xff]
    %v245 = vld [vmem:[%s4 + $0x48] sm:$0xff]
    %v246 = vld [vmem:[%s4 + $0x50] sm:$0xff]
    %v247 = vld [vmem:[%s4 + $0x58] sm:$0xff]
    %v248 = vld [vmem:[%s4 + $0x60] sm:$0xff]
    %v249 = vld [vmem:[%s4 + $0x68] sm:$0xff]
    %v250 = vld [vmem:[%s4 + $0x70] sm:$0xff]
    %v251 = vld [vmem:[%s4 + $0x78] sm:$0xff]
    %v252 = vld [vmem:[%s5] sm:$0x3]
    %v254 = vperm.slane %v252, 0
    %v255 = vperm.slane %v252, 1
    %v274 = vunpack.c.l.b16 %v236
    %v275 = vunpack.c.h.b16 %v236
    %v276 = vunpack.c.l.b16 %v237
    %v277 = vunpack.c.h.b16 %v237
    %v278 = vunpack.c.l.b16 %v238
    %v279 = vunpack.c.h.b16 %v238
    %v280 = vunpack.c.l.b16 %v239
    %v281 = vunpack.c.h.b16 %v239
    %v282 = vunpack.c.l.b16 %v240
    %v283 = vunpack.c.h.b16 %v240
    %v284 = vunpack.c.l.b16 %v241
    %v285 = vunpack.c.h.b16 %v241
    %v286 = vunpack.c.l.b16 %v242
    %v287 = vunpack.c.h.b16 %v242
    %v288 = vunpack.c.l.b16 %v243
    %v289 = vunpack.c.h.b16 %v243
    %v290 = vunpack.c.l.b16 %v244
    %v291 = vunpack.c.h.b16 %v244
    %v292 = vunpack.c.l.b16 %v245
    %v293 = vunpack.c.h.b16 %v245
    %v294 = vunpack.c.l.b16 %v246
    %v295 = vunpack.c.h.b16 %v246
    %v296 = vunpack.c.l.b16 %v247
    %v297 = vunpack.c.h.b16 %v247
    %v298 = vunpack.c.l.b16 %v248
    %v299 = vunpack.c.h.b16 %v248
    %v300 = vunpack.c.l.b16 %v249
    %v301 = vunpack.c.h.b16 %v249
    %v302 = vunpack.c.l.b16 %v250
    %v303 = vunpack.c.h.b16 %v250
    %v304 = vunpack.c.l.b16 %v251
    %v305 = vunpack.c.h.b16 %v251
    %v306 = vpack.c.b16 %v276, %v274
    %v307 = vpack.c.b16 %v277, %v275
    %v308 = vpack.c.b16 %v280, %v278
    %v309 = vpack.c.b16 %v281, %v279
    %v310 = vpack.c.b16 %v284, %v282
    %v311 = vpack.c.b16 %v285, %v283
    %v312 = vpack.c.b16 %v288, %v286
    %v313 = vpack.c.b16 %v289, %v287
    %v314 = vpack.c.b16 %v292, %v290
    %v315 = vpack.c.b16 %v293, %v291
    %v316 = vpack.c.b16 %v296, %v294
    %v317 = vpack.c.b16 %v297, %v295
    %v318 = vpack.c.b16 %v300, %v298
    %v319 = vpack.c.b16 %v301, %v299
    %v320 = vpack.c.b16 %v304, %v302
    %v321 = vpack.c.b16 %v305, %v303
    %338 = vmatpush.bf16.msra.mxu0 %v320
    %339 = vmatpush.bf16.msra.mxu0 %v318
    %340 = vmatpush.bf16.msra.mxu0 %v316
    %341 = vmatpush.bf16.msra.mxu0 %v314
    %342 = vmatpush.bf16.msra.mxu0 %v312
    %343 = vmatpush.bf16.msra.mxu0 %v310
    %344 = vmatpush.bf16.msra.mxu0 %v308
    %345 = vmatpush.bf16.msra.mxu0 %v306
    %346 = vmatmul.bf16.gmra.mxu0 %v235
    %v347 = vpop.f32.mrf.mxu0
    %v348 = vadd.f32 %v254, %v347
    %v349 = vpop.f32.mrf.mxu0
    %350 = vdwg.mxu0
    %351 = vmatpush.bf16.msra.mxu0 %v321
    %352 = vmatpush.bf16.msra.mxu0 %v319
    %353 = vmatpush.bf16.msra.mxu0 %v317
    %354 = vmatpush.bf16.msra.mxu0 %v315
    %355 = vmatpush.bf16.msra.mxu0 %v313
    %356 = vmatpush.bf16.msra.mxu0 %v311
    %357 = vmatpush.bf16.msra.mxu0 %v309
    %358 = vmatpush.bf16.msra.mxu0 %v307
    %359 = vmatmul.bf16.gmra.mxu0 %v235
    %v360 = vpop.f32.mrf.mxu0
    %v361 = vadd.f32 %v255, %v360
    %v362 = vpop.f32.mrf.mxu0
    %363 = vdwg.mxu0
    %v364 = vmax.f32 %v348, %v361
    %365 = vmax.xlane.f32.xlu0 %v364
    %v366 = vpop.xlane.xlu0 %365
    %v367 = vsub.f32 %v348, %v366
    %v368 = vsub.f32 %v361, %v366
    %v369 = vmul.f32 %v367, 1.442695
    %v370 = vpow.pop %v369
    %v371 = vmul.f32 %v368, 1.442695
    %v372 = vpow.pop %v371
    %v373 = vadd.f32 %v370, %v372
    %374 = vadd.xlane.f32.xlu0 %v373
    %v375 = vpop.xlane.xlu0 %374
    %v376 = vlog2.pop %v375
    %v377 = vmul.f32 %v376, 0.6931472
    %v378 = vsub.f32 %v367, %v377
    %v379 = vsub.f32 %v368, %v377
    %380 = vst [vmem:[#allocation5] sm:$0xff] %v378
    %381 = vst [vmem:[#allocation5 + $0x8] sm:$0xff] %v379
    // Predicated region
    $region22: #{tpu_custom_call.1} parent=1 // pred_check
      _
    $region23: #{tpu_custom_call.1} parent=1 // pred_check_branch
      %383 = sbr.rel (0) target = $region25
    $region24: #{tpu_custom_call.1} parent=1 // pred_region
      %385 = vsyncadd [#allocation6], 0
      %s387 = sshll.u32 [#allocation5], 4
      %s388 = int_to_ptr.vmem [resolvable:$true] %s387
      %s389 = sshll.u32 %s6, 4
      %s390 = int_to_ptr.hbm [resolvable:$true] %s389
      %392 = dma.vmem_to_hbm [thread:$0]  %s388, 256, %s390, [#allocation6]
    $region25: #{tpu_custom_call.1} parent=1 // pred_fallthru
      _
    // Predicated region
    $region26: #{tpu_custom_call.1} parent=1 // pred_check
      _
    $region27: #{tpu_custom_call.1} parent=1 // pred_check_branch
      %394 = sbr.rel (0) target = $region29
    $region28: #{tpu_custom_call.1} parent=1 // pred_region
      %396 = dma.done [#allocation6], 256
    $region29: #{tpu_custom_call.1} parent=1 // pred_fallthru
      _
    %397 = vsyncpa [#allocation6], 1

</llo_original>
